<compile_context>
chip_gen: v6e
topology: v6e:2x2x1
jax: 0.10.0
libtpu: 0.0.40
codegen_flags: <defaults>
</compile_context>

<pallas_src>
import functools

import jax
import jax.numpy as jnp
from jax.experimental import pallas as pl
from jax.experimental.pallas import tpu as pltpu

LN_EPS = 1e-12  # PyTorch BERT LayerNorm default


def _round_up(x: int, m: int) -> int:
    return ((x + m - 1) // m) * m


@functools.lru_cache(maxsize=None)
def _vmem_capacity_bytes() -> int:
    """Physical VMEM of the local TPU; conservative 64 MiB (v7x per-TC) fallback."""
    try:
        info = pltpu.get_tpu_info()
        for attr in ("vmem_capacity_bytes", "vmem_size_bytes", "vmem_bytes"):
            v = getattr(info, attr, None)
            if v:
                return int(v)
    except Exception:
        pass
    return 64 * 1024 * 1024


def _pick_tile_and_vmem(rows: int, H: int, stream_itemsize: int, block_rows):
    """Row-tile size and VMEM limit, sized per TPU generation."""
    vmem = _vmem_capacity_bytes()
    big_vmem = vmem >= 100 * 1024 * 1024            # v5e / v6e: 128 MiB physical
    if block_rows is None:
        cap = (2048 if stream_itemsize < 4 else 1024) if big_vmem else \
              (1024 if stream_itemsize < 4 else 512)
        # Budget (~60% of physical; rest is compiler scratch / regalloc headroom):
        #   2x double-buffered streamed tiles for x / residual / out
        #   + double-buffered resident weight + f32 matmul/LN temporaries.
        budget = int(vmem * 0.6)
        fixed = 2 * H * H * stream_itemsize + 8 * H * 4
        per_row = 6 * H * stream_itemsize + 4 * H * 4
        tm = max(8, min(cap, (budget - fixed) // per_row))
    else:
        tm = max(8, int(block_rows))
    tm = min(tm, max(8, (rows // 8) * 8))            # don't exceed the (8-aligned) row count
    tm = _round_up(tm, 8)                            # sublane aligned
    # Small-row clamp: keep at least 2 grid steps so pipelining (and v7x megacore) has work.
    while tm > 128 and pl.cdiv(rows, tm) < 2:
        tm = _round_up(tm // 2, 8)

    needed = (6 * tm * H * stream_itemsize           # 2x double-buffered x / res / out tiles
              + 2 * H * H * stream_itemsize          # double-buffered resident weight
              + 4 * tm * H * 4                       # f32 matmul / LayerNorm temporaries
              + 8 * H * 4)                           # bias / gamma / beta
    vmem_limit = int(min(max(needed * 1.5, 32 * 1024 * 1024), vmem * 0.9))
    return tm, vmem_limit


def _self_output_kernel(x_ref, res_ref, w_ref, b_ref, g_ref, beta_ref, o_ref):
    # dense: h = x @ W (weight already pre-transposed to [in, out]) + b; f32 MXU accumulation.
    h = jnp.dot(x_ref[...], w_ref[...], preferred_element_type=jnp.float32)
    h = h + b_ref[...].astype(jnp.float32)           # [1, H] broadcasts over rows
    h = h + res_ref[...].astype(jnp.float32)         # residual add

    # LayerNorm over the hidden dim (two-pass, matching PyTorch numerics):
    # XLU reductions, a single precomputed 1/H constant, rsqrt on the EUP slot.
    inv_h = jnp.float32(1.0 / h.shape[-1])
    mean = jnp.sum(h, axis=-1, keepdims=True) * inv_h
    centered = h - mean
    var = jnp.sum(centered * centered, axis=-1, keepdims=True) * inv_h
    inv_std = jax.lax.rsqrt(var + jnp.float32(LN_EPS))
    y = centered * inv_std * g_ref[...].astype(jnp.float32) + beta_ref[...].astype(jnp.float32)
    o_ref[...] = y.astype(o_ref.dtype)


@functools.partial(jax.jit, static_argnames=("block_rows", "stream_dtype"))
def modified_bert_self_output(hidden_states, input_tensor, weight, bias, gamma, beta,
                              *, block_rows=None, stream_dtype=None):
    """hidden_states, input_tensor: [B, S, H]; weight: [H, H] (PyTorch [out, in]);
    bias / gamma / beta: [H].

    stream_dtype: optional dtype (e.g. jnp.bfloat16) used to stream x / residual / weight
    through the kernel; MXU accumulation and LayerNorm math stay in f32.  Default (None)
    keeps the input dtype so numerics match the PyTorch module.
    """
    B, S, H = hidden_states.shape
    rows = B * S
    out_dtype = hidden_states.dtype
    sdt = jnp.dtype(out_dtype if stream_dtype is None else stream_dtype)
    s_item = sdt.itemsize

    # No padding / slicing in the wrapper: Pallas masks the ragged last row tile.
    x2 = hidden_states.reshape(rows, H).astype(sdt)
    r2 = input_tensor.reshape(rows, H).astype(sdt)
    wT = weight.astype(sdt).T                        # one-time [out, in] -> [in, out]
    b2 = bias.reshape(1, H)
    g2 = gamma.reshape(1, H)
    be2 = beta.reshape(1, H)

    tm, vmem_limit = _pick_tile_and_vmem(rows, H, s_item, block_rows)
    grid = (pl.cdiv(rows, tm),)

    cost = pl.CostEstimate(
        flops=2 * rows * H * H,
        transcendentals=rows,                        # one rsqrt per row
        bytes_accessed=(rows * H * (2 * s_item + jnp.dtype(out_dtype).itemsize)
                        + H * H * s_item
                        + 3 * H * jnp.dtype(bias.dtype).itemsize),
    )

    # TODO(synk): single-buffer the constant weight/bias/gamma/beta blocks via
    # pipeline_mode=pl.Buffered(1) once confirmed supported on the target jaxlib
    # (frees H*H*itemsize of VMEM on v7x's 64 MiB per-TC budget).
    out = pl.pallas_call(
        _self_output_kernel,
        out_shape=jax.ShapeDtypeStruct((rows, H), out_dtype),
        grid=grid,
        in_specs=[
            pl.BlockSpec((tm, H), lambda i: (i, 0)),   # hidden_states tile
            pl.BlockSpec((tm, H), lambda i: (i, 0)),   # residual tile
            pl.BlockSpec((H, H), lambda i: (0, 0)),    # weight [in, out], VMEM-resident
            pl.BlockSpec((1, H), lambda i: (0, 0)),    # bias
            pl.BlockSpec((1, H), lambda i: (0, 0)),    # LN gamma
            pl.BlockSpec((1, H), lambda i: (0, 0)),    # LN beta
        ],
        out_specs=pl.BlockSpec((tm, H), lambda i: (i, 0)),
        compiler_params=pltpu.CompilerParams(
            dimension_semantics=("parallel",),         # row tiles are independent
            vmem_limit_bytes=vmem_limit,
        ),
        cost_estimate=cost,
    )(x2, r2, wT, b2, g2, be2)

    return out.reshape(B, S, H)


def _reference(hidden_states, input_tensor, weight, bias, gamma, beta):
    h = jnp.einsum("bsh,oh->bso", hidden_states, weight) + bias
    h = h + input_tensor
    mean = jnp.mean(h, axis=-1, keepdims=True)
    var = jnp.mean((h - mean) ** 2, axis=-1, keepdims=True)
    return (h - mean) * jax.lax.rsqrt(var + LN_EPS) * gamma + beta


if __name__ == "__main__":
    key = jax.random.PRNGKey(0)
    k1, k2, k3, k4 = jax.random.split(key, 4)

    B, S, H = 2, 8, 32
    hidden_states = jax.random.normal(k1, (B, S, H), dtype=jnp.float32)
    input_tensor = jax.random.normal(k2, (B, S, H), dtype=jnp.float32)

    # Synthetic parameters (BertSelfOutput: Linear(H, H) in PyTorch [out, in] layout, LayerNorm(H)).
    weight = jax.random.normal(k3, (H, H), dtype=jnp.float32) * 0.02
    bias = jax.random.normal(k4, (H,), dtype=jnp.float32) * 0.02
    gamma = jnp.ones((H,), dtype=jnp.float32)
    beta = jnp.zeros((H,), dtype=jnp.float32)

    out = jax.block_until_ready(
        modified_bert_self_output(hidden_states, input_tensor, weight, bias, gamma, beta))
    ref = _reference(hidden_states, input_tensor, weight, bias, gamma, beta)
    assert out.shape == (B, S, H)
    assert jnp.allclose(out, ref, atol=1e-5, rtol=1e-5), "Pallas kernel mismatch (f32 path)"

    # Ragged multi-tile path: rows not divisible by the tile -> Pallas masks the last tile,
    # no wrapper-side pad / slice copies.
    B2, S2 = 3, 7
    hs2 = jax.random.normal(k1, (B2, S2, H), dtype=jnp.float32)
    it2 = jax.random.normal(k2, (B2, S2, H), dtype=jnp.float32)
    out2 = jax.block_until_ready(
        modified_bert_self_output(hs2, it2, weight, bias, gamma, beta, block_rows=8))
    ref2 = _reference(hs2, it2, weight, bias, gamma, beta)
    assert jnp.allclose(out2, ref2, atol=1e-5, rtol=1e-5), "Pallas kernel mismatch (ragged path)"

    # bf16 streaming path (memory-bound speedup); f32 accumulation / LayerNorm, looser tolerance.
    hs3 = hidden_states.astype(jnp.bfloat16)
    it3 = input_tensor.astype(jnp.bfloat16)
    out3 = jax.block_until_ready(
        modified_bert_self_output(hs3, it3, weight, bias, gamma, beta,
                                  stream_dtype=jnp.bfloat16))
    ref3 = _reference(hs3.astype(jnp.float32), it3.astype(jnp.float32),
                      weight, bias, gamma, beta)
    assert jnp.allclose(out3.astype(jnp.float32), ref3, atol=0.1, rtol=0.1), \
        "Pallas kernel mismatch (bf16 streaming path)"

    print("KERNEL_OK")
</pallas_src>

<mosaic_0001>
module attributes {stable_mosaic.version = 11 : i64} {
  func.func @_self_output_kernel(%arg0: i32, %arg1: memref<16x32xf32, #tpu.memory_space<vmem>>, %arg2: memref<16x32xf32, #tpu.memory_space<vmem>>, %arg3: memref<32x32xf32, #tpu.memory_space<vmem>>, %arg4: memref<1x32xf32, #tpu.memory_space<vmem>>, %arg5: memref<1x32xf32, #tpu.memory_space<vmem>>, %arg6: memref<1x32xf32, #tpu.memory_space<vmem>>, %arg7: memref<16x32xf32, #tpu.memory_space<vmem>>) attributes {dimension_semantics = [#tpu.dimension_semantics<parallel>], iteration_bounds = array<i64: 1>, scalar_prefetch = 0 : i64, scratch_operands = 0 : i64, tpu.core_type = #tpu.core_type<tc>, window_params = [{transform_indices = @transform_0, window_bounds = array<i64: 16, 32>}, {transform_indices = @transform_1, window_bounds = array<i64: 16, 32>}, {pipeline_mode = #tpu.pipeline_mode<synchronous>, transform_indices = @transform_2, window_bounds = array<i64: 32, 32>}, {pipeline_mode = #tpu.pipeline_mode<synchronous>, transform_indices = @transform_3, window_bounds = array<i64: 1, 32>}, {pipeline_mode = #tpu.pipeline_mode<synchronous>, transform_indices = @transform_4, window_bounds = array<i64: 1, 32>}, {pipeline_mode = #tpu.pipeline_mode<synchronous>, transform_indices = @transform_5, window_bounds = array<i64: 1, 32>}, {transform_indices = @transform_6, window_bounds = array<i64: 16, 32>}]} {
    %c0 = arith.constant 0 : index
    %c0_0 = arith.constant 0 : index
    %0 = vector.load %arg1[%c0, %c0_0] : memref<16x32xf32, #tpu.memory_space<vmem>>, vector<16x32xf32>
    %c0_1 = arith.constant 0 : index
    %c0_2 = arith.constant 0 : index
    %1 = vector.load %arg3[%c0_1, %c0_2] : memref<32x32xf32, #tpu.memory_space<vmem>>, vector<32x32xf32>
    %cst = arith.constant dense<0.000000e+00> : vector<16x32xf32>
    %2 = tpu.matmul %0, %1, %cst {dimension_numbers = #tpu.dot_dimension_numbers<[1], [0], [0], [1], [0, 0, 1, 1], [], []>} : vector<16x32xf32>, vector<32x32xf32>, vector<16x32xf32> -> vector<16x32xf32>
    %c0_3 = arith.constant 0 : index
    %c0_4 = arith.constant 0 : index
    %3 = vector.load %arg4[%c0_3, %c0_4] : memref<1x32xf32, #tpu.memory_space<vmem>>, vector<1x32xf32>
    %4 = vector.broadcast %3 : vector<1x32xf32> to vector<16x32xf32>
    %5 = arith.addf %2, %4 : vector<16x32xf32>
    %c0_5 = arith.constant 0 : index
    %c0_6 = arith.constant 0 : index
    %6 = vector.load %arg2[%c0_5, %c0_6] : memref<16x32xf32, #tpu.memory_space<vmem>>, vector<16x32xf32>
    %7 = arith.addf %5, %6 : vector<16x32xf32>
    %cst_7 = arith.constant dense<0.000000e+00> : vector<16xf32>
    %8 = vector.multi_reduction <add>, %7, %cst_7 [1] : vector<16x32xf32> to vector<16xf32>
    %9 = vector.shape_cast %8 : vector<16xf32> to vector<16x1xf32>
    %cst_8 = arith.constant 3.125000e-02 : f32
    %10 = vector.broadcast %cst_8 : f32 to vector<16x1xf32>
    %11 = arith.mulf %9, %10 : vector<16x1xf32>
    %12 = vector.broadcast %11 : vector<16x1xf32> to vector<16x32xf32>
    %13 = arith.subf %7, %12 : vector<16x32xf32>
    %14 = arith.mulf %13, %13 : vector<16x32xf32>
    %cst_9 = arith.constant dense<0.000000e+00> : vector<16xf32>
    %15 = vector.multi_reduction <add>, %14, %cst_9 [1] : vector<16x32xf32> to vector<16xf32>
    %16 = vector.shape_cast %15 : vector<16xf32> to vector<16x1xf32>
    %cst_10 = arith.constant 3.125000e-02 : f32
    %17 = vector.broadcast %cst_10 : f32 to vector<16x1xf32>
    %18 = arith.mulf %16, %17 : vector<16x1xf32>
    %cst_11 = arith.constant 9.99999996E-13 : f32
    %19 = vector.broadcast %cst_11 : f32 to vector<16x1xf32>
    %20 = arith.addf %18, %19 : vector<16x1xf32>
    %21 = math.rsqrt %20 : vector<16x1xf32>
    %22 = vector.broadcast %21 : vector<16x1xf32> to vector<16x32xf32>
    %23 = arith.mulf %13, %22 : vector<16x32xf32>
    %c0_12 = arith.constant 0 : index
    %c0_13 = arith.constant 0 : index
    %24 = vector.load %arg5[%c0_12, %c0_13] : memref<1x32xf32, #tpu.memory_space<vmem>>, vector<1x32xf32>
    %25 = vector.broadcast %24 : vector<1x32xf32> to vector<16x32xf32>
    %26 = arith.mulf %23, %25 : vector<16x32xf32>
    %c0_14 = arith.constant 0 : index
    %c0_15 = arith.constant 0 : index
    %27 = vector.load %arg6[%c0_14, %c0_15] : memref<1x32xf32, #tpu.memory_space<vmem>>, vector<1x32xf32>
    %28 = vector.broadcast %27 : vector<1x32xf32> to vector<16x32xf32>
    %29 = arith.addf %26, %28 : vector<16x32xf32>
    %c0_16 = arith.constant 0 : index
    %c0_17 = arith.constant 0 : index
    %30 = vector.load %arg7[%c0_16, %c0_17] : memref<16x32xf32, #tpu.memory_space<vmem>>, vector<16x32xf32>
    tpu.vector_store %arg7[%c0_16, %c0_17], %29 {strides = array<i32>} : memref<16x32xf32, #tpu.memory_space<vmem>>, vector<16x32xf32>,
    return
  }
  func.func @transform_0(%arg0: i32) -> (i32, i32) {
    %c0_i32 = arith.constant 0 : i32
    %c0_i32_0 = arith.constant 0 : i32
    return %arg0, %c0_i32 : i32, i32
  }
  func.func @transform_1(%arg0: i32) -> (i32, i32) {
    %c0_i32 = arith.constant 0 : i32
    %c0_i32_0 = arith.constant 0 : i32
    return %arg0, %c0_i32 : i32, i32
  }
  func.func @transform_2(%arg0: i32) -> (i32, i32) {
    %c0_i32 = arith.constant 0 : i32
    %c0_i32_0 = arith.constant 0 : i32
    %c0_i32_1 = arith.constant 0 : i32
    return %c0_i32, %c0_i32_0 : i32, i32
  }
  func.func @transform_3(%arg0: i32) -> (i32, i32) {
    %c0_i32 = arith.constant 0 : i32
    %c0_i32_0 = arith.constant 0 : i32
    %c0_i32_1 = arith.constant 0 : i32
    return %c0_i32, %c0_i32_0 : i32, i32
  }
  func.func @transform_4(%arg0: i32) -> (i32, i32) {
    %c0_i32 = arith.constant 0 : i32
    %c0_i32_0 = arith.constant 0 : i32
    %c0_i32_1 = arith.constant 0 : i32
    return %c0_i32, %c0_i32_0 : i32, i32
  }
  func.func @transform_5(%arg0: i32) -> (i32, i32) {
    %c0_i32 = arith.constant 0 : i32
    %c0_i32_0 = arith.constant 0 : i32
    %c0_i32_1 = arith.constant 0 : i32
    return %c0_i32, %c0_i32_0 : i32, i32
  }
  func.func @transform_6(%arg0: i32) -> (i32, i32) {
    %c0_i32 = arith.constant 0 : i32
    %c0_i32_0 = arith.constant 0 : i32
    return %arg0, %c0_i32 : i32, i32
  }
}

</mosaic_0001>

<llo_original>
// kernel: modified_bert_self_output.1
$region0: #{modified_bert_self_output.1}
  #allocation0 [shape = 'u32[]', space=smem, size = 0x4, offset = 0x4, fixed_abs, tag = 'smem constant byte address 0x4 - core index']
  #allocation1 [shape = 'u32[144,128]{1,0:T(1,128)}', space=vmem, size = 0x12000, scoped, tag = 'internal scratch']
  %s0 = inlined_call_operand.vmem [shape: f32[16,32], index: 0, kind: input, shape index: {}]
  %s1 = inlined_call_operand.vmem [shape: f32[16,32], index: 1, kind: input, shape index: {}]
  %s2 = inlined_call_operand.vmem [shape: f32[32,32], index: 2, kind: input, shape index: {}]
  %s3 = inlined_call_operand.vmem [shape: f32[1,32], index: 3, kind: input, shape index: {}]
  %s4 = inlined_call_operand.vmem [shape: f32[1,32], index: 4, kind: input, shape index: {}]
  %s5 = inlined_call_operand.vmem [shape: f32[1,32], index: 5, kind: input, shape index: {}]
  %s6 = inlined_call_operand.hbm [shape: f32[16,32], index: 6, kind: output, shape index: {}]
  %s7 = sld [smem:[#allocation0]]
  $region34: #{modified_bert_self_output.1} parent=0
    _
  %s9 = ssub.s32 1, %s7
  %s10 = scalar_select 0, %s9, %s7
  $region1: #{modified_bert_self_output.1} parent=0
    #allocation2 [shape = 'u8[8192]{0}', space=vmem, size = 0x2000, scoped, tag = 'output window, operand 0, single buffered']
    #allocation3 [shape = 's32[1]{0}', space=sflag, size = 0x4, scoped, tag = 'scoped memory for modified_bert_self_output.1']
    %11 = vsyncpa [#allocation3], 0
    // Predicated region
    $region2: #{modified_bert_self_output.1} parent=1 // pred_check
      _
    $region3: #{modified_bert_self_output.1} parent=1 // pred_check_branch
      %13 = sbr.rel (0) target = $region5
    $region4: #{modified_bert_self_output.1} parent=1 // pred_region
      _
    $region5: #{modified_bert_self_output.1} parent=1 // pred_fallthru
      _
    // Predicated region
    $region6: #{modified_bert_self_output.1} parent=1 // pred_check
      _
    $region7: #{modified_bert_self_output.1} parent=1 // pred_check_branch
      %15 = sbr.rel (0) target = $region9
    $region8: #{modified_bert_self_output.1} parent=1 // pred_region
      _
    $region9: #{modified_bert_self_output.1} parent=1 // pred_fallthru
      _
    // Predicated region
    $region10: #{modified_bert_self_output.1} parent=1 // pred_check
      _
    $region11: #{modified_bert_self_output.1} parent=1 // pred_check_branch
      %17 = sbr.rel (0) target = $region13
    $region12: #{modified_bert_self_output.1} parent=1 // pred_region
      _
    $region13: #{modified_bert_self_output.1} parent=1 // pred_fallthru
      _
    // Predicated region
    $region14: #{modified_bert_self_output.1} parent=1 // pred_check
      _
    $region15: #{modified_bert_self_output.1} parent=1 // pred_check_branch
      %19 = sbr.rel (0) target = $region17
    $region16: #{modified_bert_self_output.1} parent=1 // pred_region
      _
    $region17: #{modified_bert_self_output.1} parent=1 // pred_fallthru
      _
    // Predicated region
    $region18: #{modified_bert_self_output.1} parent=1 // pred_check
      _
    $region19: #{modified_bert_self_output.1} parent=1 // pred_check_branch
      %21 = sbr.rel (0) target = $region21
    $region20: #{modified_bert_self_output.1} parent=1 // pred_region
      _
    $region21: #{modified_bert_self_output.1} parent=1 // pred_fallthru
      _
    // Predicated region
    $region22: #{modified_bert_self_output.1} parent=1 // pred_check
      _
    $region23: #{modified_bert_self_output.1} parent=1 // pred_check_branch
      %23 = sbr.rel (0) target = $region25
    $region24: #{modified_bert_self_output.1} parent=1 // pred_region
      _
    $region25: #{modified_bert_self_output.1} parent=1 // pred_fallthru
      _
    %v24 = vld [vmem:[%s0] sm:$0xff]
    %v25 = vld [vmem:[%s0 + $0x8] sm:$0xff]
    %v26 = vld [vmem:[%s2] sm:$0xff]
    %v27 = vld [vmem:[%s2 + $0x8] sm:$0xff]
    %v28 = vld [vmem:[%s2 + $0x10] sm:$0xff]
    %v29 = vld [vmem:[%s2 + $0x18] sm:$0xff]
    %v30 = vld [vmem:[%s3] sm:$0x1]
    %v32 = vlaneseq
    %v33 = vshrl.u32 %v32, 7
    %v34 = vsub.s32 0, %v33
    %v35 = vrot.slane %v30, %v34
    %vm37 = vcmask 261120
    %v39 = vsel %vm37, %v24, 0
    %v42 = vsel %vm37, %v25, 0
    %44 = vmatprep.subr.mxu0 0.0
    %45 = vmatpush1.msra.mxu0 0.0
    %46 = vmatprep.subr.mxu0 0.0
    %47 = vmatpush1.msra.mxu0 0.0
    %48 = vmatprep.subr.mxu0 0.0
    %49 = vmatpush1.msra.mxu0 0.0
    %50 = vmatprep.subr.mxu0 0.0
    %51 = vmatpush1.msra.mxu0 0.0
    %52 = vmatprep.subr.mxu0 0.0
    %53 = vmatpush1.msra.mxu0 0.0
    %54 = vmatprep.subr.mxu0 0.0
    %55 = vmatpush1.msra.mxu0 0.0
    %56 = vmatprep.subr.mxu0 0.0
    %57 = vmatpush1.msra.mxu0 0.0
    %58 = vmatprep.subr.mxu0 0.0
    %59 = vmatpush1.msra.mxu0 0.0
    %60 = vmatprep.subr.mxu0 0.0
    %61 = vmatpush1.msra.mxu0 0.0
    %62 = vmatprep.subr.mxu0 0.0
    %63 = vmatpush1.msra.mxu0 0.0
    %64 = vmatprep.subr.mxu0 0.0
    %65 = vmatpush1.msra.mxu0 0.0
    %66 = vmatprep.subr.mxu0 0.0
    %67 = vmatpush1.msra.mxu0 0.0
    %68 = vmatprep.subr.mxu0 0.0
    %69 = vmatpush1.msra.mxu0 %v29
    %70 = vmatprep.subr.mxu0 0.0
    %71 = vmatpush1.msra.mxu0 %v28
    %72 = vmatprep.subr.mxu0 0.0
    %73 = vmatpush1.msra.mxu0 %v27
    %74 = vmatprep.subr.mxu0 0.0
    %75 = vmatpush1.msra.mxu0 %v26
    %76 = vmatprep.subr.mxu0 0.0
    %77 = vmatpush2.msra.mxu0 0.0
    %78 = vmatprep.subr.mxu0 0.0
    %79 = vmatpush2.msra.mxu0 0.0
    %80 = vmatprep.subr.mxu0 0.0
    %81 = vmatpush2.msra.mxu0 0.0
    %82 = vmatprep.subr.mxu0 0.0
    %83 = vmatpush2.msra.mxu0 0.0
    %84 = vmatprep.subr.mxu0 0.0
    %85 = vmatpush2.msra.mxu0 0.0
    %86 = vmatprep.subr.mxu0 0.0
    %87 = vmatpush2.msra.mxu0 0.0
    %88 = vmatprep.subr.mxu0 0.0
    %89 = vmatpush2.msra.mxu0 0.0
    %90 = vmatprep.subr.mxu0 0.0
    %91 = vmatpush2.msra.mxu0 0.0
    %92 = vmatprep.subr.mxu0 0.0
    %93 = vmatpush2.msra.mxu0 0.0
    %94 = vmatprep.subr.mxu0 0.0
    %95 = vmatpush2.msra.mxu0 0.0
    %96 = vmatprep.subr.mxu0 0.0
    %97 = vmatpush2.msra.mxu0 0.0
    %98 = vmatprep.subr.mxu0 0.0
    %99 = vmatpush2.msra.mxu0 0.0
    %100 = vmatprep.subr.mxu0 0.0
    %101 = vmatpush2.msra.mxu0 0.0
    %102 = vmatprep.subr.mxu0 0.0
    %103 = vmatpush2.msra.mxu0 0.0
    %104 = vmatprep.subr.mxu0 0.0
    %105 = vmatpush2.msra.mxu0 0.0
    %106 = vmatprep.subr.mxu0 0.0
    %107 = vmatpush2.msra.mxu0 0.0
    %108 = vmatprep.mubr.f32.mxu0 0.0
    %109 = vmatmul.mubr.f32.gmra.mxu0 %v39
    %v110 = vpop.f32.mrf.mxu0
    %v111 = vadd.f32 %v35, %v110
    %v112 = vpop.f32.mrf.mxu0
    %113 = vmatprep.mubr.f32.mxu0 0.0
    %114 = vmatmul.mubr.f32.gmra.mxu0 %v42
    %v115 = vpop.f32.mrf.mxu0
    %v116 = vadd.f32 %v35, %v115
    %v117 = vpop.f32.mrf.mxu0
    %118 = vdwg.mxu0
    %v119 = vld [vmem:[%s1] sm:$0xff]
    %v120 = vld [vmem:[%s1 + $0x8] sm:$0xff]
    %v121 = vadd.f32 %v111, %v119
    %v122 = vadd.f32 %v116, %v120
    %v123 = vsel %vm37, %v121, 0.0
    %124 = vadd.xlane.f32.xlu0 %v123
    %v125 = vpop.xlane.xlu0 %124
    %v126 = vsel %vm37, %v122, 0.0
    %127 = vadd.xlane.f32.xlu0 %v126
    %v128 = vpop.xlane.xlu0 %127
    %v129 = vmul.f32 %v125, 0.03125
    %v130 = vmul.f32 %v128, 0.03125
    %v131 = vsub.f32 %v121, %v129
    %v132 = vsub.f32 %v122, %v130
    %v133 = vmul.f32 %v131, %v131
    %v134 = vmul.f32 %v132, %v132
    %v135 = vsel %vm37, %v133, 0.0
    %136 = vadd.xlane.f32.xlu0 %v135
    %v137 = vpop.xlane.xlu0 %136
    %v138 = vsel %vm37, %v134, 0.0
    %139 = vadd.xlane.f32.xlu0 %v138
    %v140 = vpop.xlane.xlu0 %139
    %v141 = vmul.f32 %v137, 0.03125
    %v142 = vmul.f32 %v140, 0.03125
    %v143 = vadd.f32 %v141, 1e-12
    %v144 = vadd.f32 %v142, 1e-12
    %v145 = vrsqrt.pop %v143
    %v146 = vrsqrt.pop %v144
    %v147 = vmul.f32 %v131, %v145
    %v148 = vmul.f32 %v132, %v146
    %v149 = vld [vmem:[%s4] sm:$0x1]
    %v151 = vlaneseq
    %v152 = vshrl.u32 %v151, 7
    %v153 = vsub.s32 0, %v152
    %v154 = vrot.slane %v149, %v153
    %v156 = vmul.f32 %v147, %v154
    %v157 = vmul.f32 %v148, %v154
    %v158 = vld [vmem:[%s5] sm:$0x1]
    %v160 = vlaneseq
    %v161 = vshrl.u32 %v160, 7
    %v162 = vsub.s32 0, %v161
    %v163 = vrot.slane %v158, %v162
    %v165 = vadd.f32 %v156, %v163
    %v166 = vadd.f32 %v157, %v163
    %167 = vst.msk [vmem:[#allocation2] sm:$0xff] %vm37, %v165
    %168 = vst.msk [vmem:[#allocation2 + $0x8] sm:$0xff] %vm37, %v166
    // Predicated region
    $region26: #{modified_bert_self_output.1} parent=1 // pred_check
      _
    $region27: #{modified_bert_self_output.1} parent=1 // pred_check_branch
      %170 = sbr.rel (0) target = $region29
    $region28: #{modified_bert_self_output.1} parent=1 // pred_region
      %s172 = ssub.s32 256, 256
      %173 = vsyncadd [#allocation3], %s172
      %s174 = sshll.u32 [#allocation2], 4
      %s175 = int_to_ptr.vmem [resolvable:$true] %s174
      %180 = dma.vmem_to_hbm [thread:$0]  %s175, 256, %s6, [#allocation3], 128, 128, 8
    $region29: #{modified_bert_self_output.1} parent=1 // pred_fallthru
      _
    // Predicated region
    $region30: #{modified_bert_self_output.1} parent=1 // pred_check
      _
    $region31: #{modified_bert_self_output.1} parent=1 // pred_check_branch
      %182 = sbr.rel (0) target = $region33
    $region32: #{modified_bert_self_output.1} parent=1 // pred_region
      %183 = dma.done [#allocation3], 256
    $region33: #{modified_bert_self_output.1} parent=1 // pred_fallthru
      _
    %184 = vsyncpa [#allocation3], 1

</llo_original>
